<compile_context>
chip_gen: v6e
topology: v6e:2x2x1
jax: 0.10.0
libtpu: 0.0.40
codegen_flags: <defaults>
</compile_context>

<pallas_src>
import functools

import jax
import jax.numpy as jnp
from jax.experimental import pallas as pl
from jax.experimental.pallas import tpu as pltpu


def _round_up(x, m):
    return (x + m - 1) // m * m


def _patch_proj_kernel(x_ref, w_ref, b_ref, o_ref):
    # x_ref: (tm, K) bf16 patches; w_ref: (K, tn) bf16; b_ref: (1, tn) f32;
    # o_ref: (tm, tn).  f32 accumulation on the MXU, row-broadcast bias add.
    acc = jnp.dot(x_ref[...], w_ref[...], preferred_element_type=jnp.float32)
    o_ref[...] = (acc + b_ref[...]).astype(o_ref.dtype)


def conv_embedding(images, weight, bias, patch_shape, out_dtype=None):
    """Pallas equivalent of ConvEmbedding.forward.

    images: (B, C, H, W) float32 (NCHW, like PyTorch)
    weight: (d_model, C, ph, pw)  (PyTorch Conv2d weight layout)
    bias:   (d_model,)
    returns: (B, n_tokens, d_model), n_tokens = (H//ph) * (W//pw)

    Note: patches and weight are cast to bf16 for the MXU (f32 accumulation),
    so results differ from a pure-f32 conv at ~bf16 precision.
    """
    ph, pw = patch_shape
    B, C, H, W = images.shape
    d_model = weight.shape[0]
    nh, nw = H // ph, W // pw
    n_tokens = nh * nw
    if out_dtype is None:
        out_dtype = images.dtype
    out_bytes = jnp.dtype(out_dtype).itemsize

    # ---- patch extraction: NCHW -> (M, K) = (B*n_tokens, C*ph*pw), bf16 ----
    # Cast before the transpose so the extraction copy moves half the bytes.
    x = images.astype(jnp.bfloat16).reshape(B, C, nh, ph, nw, pw)
    x = jnp.transpose(x, (0, 2, 4, 1, 3, 5))        # (B, nh, nw, C, ph, pw)
    x = x.reshape(B * n_tokens, C * ph * pw)         # (M, K) -- no padding

    M, K = x.shape
    N = d_model

    # PyTorch conv: out[o] = sum_{c,i,j} w[o,c,i,j] * patch[c,i,j] + b[o]
    w = weight.reshape(d_model, K).T.astype(jnp.bfloat16)     # (K, N)
    b = bias.astype(jnp.float32).reshape(1, N)                # (1, N)

    # ---- lane-dense output: pad only the (small) weight/bias N dim ----
    Np = _round_up(N, 128)
    if Np != N:
        w = jnp.pad(w, ((0, 0), (0, Np - N)))
        b = jnp.pad(b, ((0, 0), (0, Np - N)))

    # ---- tiling ----
    # Single resident weight block (tn = Np) whenever it comfortably fits in
    # VMEM; otherwise fall back to tiling N with the largest 128-multiple tile
    # that divides Np.
    if K * Np * 2 <= 8 * 1024 * 1024:
        tn = Np
    else:
        tn = next(t for t in (512, 256, 128) if Np % t == 0)

    tm = min(1024, M)

    def vmem_bytes(tm_):
        return (2 * tm_ * K * 2            # x tiles (double-buffered, bf16)
                + 2 * K * tn * 2           # weight tile(s)
                + 2 * tn * 4               # bias
                + 2 * tm_ * tn * out_bytes)  # output tiles

    # Stay well inside every generation's scoped-VMEM budget (v7x: 64 MiB
    # physical / 32 MiB default; v5e default is only 16 MiB so we pass an
    # explicit limit below).
    while vmem_bytes(tm) > 26 * 1024 * 1024 and tm > 64:
        tm //= 2
    vmem_limit = int(min(vmem_bytes(tm) + (4 << 20), 30 * 1024 * 1024))

    gm = pl.cdiv(M, tm)
    gn = Np // tn
    grid = (gm, gn)

    cost = pl.CostEstimate(
        flops=2 * M * K * Np,
        transcendentals=0,
        bytes_accessed=(M * K * 2                      # patches, read once
                        + K * Np * 2 * (gm if gn > 1 else 1)  # weight
                        + Np * 4                       # bias
                        + M * Np * out_bytes),         # output write
    )

    out = pl.pallas_call(
        _patch_proj_kernel,
        out_shape=jax.ShapeDtypeStruct((M, Np), out_dtype),
        grid_spec=pltpu.PrefetchScalarGridSpec(
            num_scalar_prefetch=0,
            grid=grid,
            in_specs=[
                pl.BlockSpec((tm, K), lambda i, j: (i, 0)),   # patches
                pl.BlockSpec((K, tn), lambda i, j: (0, j)),   # weight (resident when gn==1)
                pl.BlockSpec((1, tn), lambda i, j: (0, j)),   # bias (fetched once when gn==1)
            ],
            out_specs=pl.BlockSpec((tm, tn), lambda i, j: (i, j)),
        ),
        compiler_params=pltpu.CompilerParams(
            dimension_semantics=("parallel", "parallel"),
            vmem_limit_bytes=vmem_limit),
        cost_estimate=cost,
    )(x, w, b)

    if Np != N:
        out = out[:, :N]
    return out.reshape(B, n_tokens, d_model)


if __name__ == "__main__":
    # Small shapes consistent with the module: batch=2, channels=4,
    # spatial=16x16, patch=4x4 -> 16 tokens, d_model=32.
    B, C, H, W = 2, 4, 16, 16
    patch_shape = (4, 4)
    d_model = 32

    key = jax.random.PRNGKey(0)
    k_img, k_w, k_b = jax.random.split(key, 3)

    images = jax.random.normal(k_img, (B, C, H, W), dtype=jnp.float32)
    # Shapes match nn.Conv2d(C, d_model, kernel_size=patch, stride=patch).
    weight = jax.random.normal(
        k_w, (d_model, C, patch_shape[0], patch_shape[1]), dtype=jnp.float32
    ) * 0.05
    bias = jax.random.normal(k_b, (d_model,), dtype=jnp.float32) * 0.05

    fn = jax.jit(functools.partial(conv_embedding, patch_shape=patch_shape))
    out = fn(images, weight, bias)
    jax.block_until_ready(out)

    # Pure-JAX f32 reference of the conv-as-matmul semantics (kernel runs the
    # MXU in bf16 with f32 accumulation, so tolerance is relaxed accordingly).
    ph, pw = patch_shape
    nh, nw = H // ph, W // pw
    xr = images.reshape(B, C, nh, ph, nw, pw).transpose(0, 2, 4, 1, 3, 5)
    xr = xr.reshape(B * nh * nw, C * ph * pw)
    ref = (xr @ weight.reshape(d_model, -1).T + bias).reshape(B, nh * nw, d_model)

    assert out.shape == (B, nh * nw, d_model)
    assert out.dtype == images.dtype
    assert jnp.allclose(out, ref, atol=2e-2, rtol=2e-2)

    print("KERNEL_OK")
</pallas_src>

<mosaic_0001>
module attributes {stable_mosaic.version = 11 : i64} {
  func.func @_patch_proj_kernel(%arg0: i32, %arg1: i32, %arg2: memref<32x64xbf16, #tpu.memory_space<vmem>>, %arg3: memref<64x128xbf16, #tpu.memory_space<vmem>>, %arg4: memref<1x128xf32, #tpu.memory_space<vmem>>, %arg5: memref<32x128xf32, #tpu.memory_space<vmem>>) attributes {dimension_semantics = [#tpu.dimension_semantics<parallel>, #tpu.dimension_semantics<parallel>], iteration_bounds = array<i64: 1, 1>, scalar_prefetch = 0 : i64, scratch_operands = 0 : i64, tpu.core_type = #tpu.core_type<tc>, window_params = [{transform_indices = @transform_0, window_bounds = array<i64: 32, 64>}, {transform_indices = @transform_1, window_bounds = array<i64: 64, 128>}, {transform_indices = @transform_2, window_bounds = array<i64: 1, 128>}, {transform_indices = @transform_3, window_bounds = array<i64: 32, 128>}]} {
    %c0 = arith.constant 0 : index
    %c0_0 = arith.constant 0 : index
    %0 = vector.load %arg2[%c0, %c0_0] : memref<32x64xbf16, #tpu.memory_space<vmem>>, vector<32x64xbf16>
    %c0_1 = arith.constant 0 : index
    %c0_2 = arith.constant 0 : index
    %1 = vector.load %arg3[%c0_1, %c0_2] : memref<64x128xbf16, #tpu.memory_space<vmem>>, vector<64x128xbf16>
    %cst = arith.constant dense<0.000000e+00> : vector<32x128xf32>
    %2 = tpu.matmul %0, %1, %cst {dimension_numbers = #tpu.dot_dimension_numbers<[1], [0], [0], [1], [0, 0, 1, 1], [], []>} : vector<32x64xbf16>, vector<64x128xbf16>, vector<32x128xf32> -> vector<32x128xf32>
    %c0_3 = arith.constant 0 : index
    %c0_4 = arith.constant 0 : index
    %3 = vector.load %arg4[%c0_3, %c0_4] : memref<1x128xf32, #tpu.memory_space<vmem>>, vector<1x128xf32>
    %4 = vector.broadcast %3 : vector<1x128xf32> to vector<32x128xf32>
    %5 = arith.addf %2, %4 : vector<32x128xf32>
    %c0_5 = arith.constant 0 : index
    %c0_6 = arith.constant 0 : index
    %6 = vector.load %arg5[%c0_5, %c0_6] : memref<32x128xf32, #tpu.memory_space<vmem>>, vector<32x128xf32>
    tpu.vector_store %arg5[%c0_5, %c0_6], %5 {strides = array<i32>} : memref<32x128xf32, #tpu.memory_space<vmem>>, vector<32x128xf32>,
    return
  }
  func.func @transform_0(%arg0: i32, %arg1: i32) -> (i32, i32) {
    %c0_i32 = arith.constant 0 : i32
    %c0_i32_0 = arith.constant 0 : i32
    return %arg0, %c0_i32 : i32, i32
  }
  func.func @transform_1(%arg0: i32, %arg1: i32) -> (i32, i32) {
    %c0_i32 = arith.constant 0 : i32
    %c0_i32_0 = arith.constant 0 : i32
    return %c0_i32, %arg1 : i32, i32
  }
  func.func @transform_2(%arg0: i32, %arg1: i32) -> (i32, i32) {
    %c0_i32 = arith.constant 0 : i32
    %c0_i32_0 = arith.constant 0 : i32
    return %c0_i32, %arg1 : i32, i32
  }
  func.func @transform_3(%arg0: i32, %arg1: i32) -> (i32, i32) {
    %c0_i32 = arith.constant 0 : i32
    return %arg0, %arg1 : i32, i32
  }
}

</mosaic_0001>

<llo_original>
// kernel: conv_embedding.1
$region0: #{conv_embedding.1}
  #allocation0 [shape = 'u32[]', space=smem, size = 0x4, offset = 0x4, fixed_abs, tag = 'smem constant byte address 0x4 - core index']
  #allocation1 [shape = 'u32[144,128]{1,0:T(1,128)}', space=vmem, size = 0x12000, scoped, tag = 'internal scratch']
  %s0 = inlined_call_operand.vmem [shape: bf16[32,64], index: 0, kind: input, shape index: {}]
  %s1 = inlined_call_operand.vmem [shape: bf16[64,128], index: 1, kind: input, shape index: {}]
  %s2 = inlined_call_operand.vmem [shape: f32[1,128], index: 2, kind: input, shape index: {}]
  %s3 = inlined_call_operand.hbm [shape: f32[32,128], index: 3, kind: output, shape index: {}]
  %s4 = sld [smem:[#allocation0]]
  $region22: #{conv_embedding.1} parent=0
    _
  %s6 = ssub.s32 1, %s4
  %s7 = scalar_select 0, %s6, %s4
  $region1: #{conv_embedding.1} parent=0
    #allocation2 [shape = 'u8[16384]{0}', space=vmem, size = 0x4000, scoped, tag = 'output window, operand 0, single buffered']
    #allocation3 [shape = 's32[1]{0}', space=sflag, size = 0x4, scoped, tag = 'scoped memory for conv_embedding.1']
    %8 = vsyncpa [#allocation3], 0
    // Predicated region
    $region2: #{conv_embedding.1} parent=1 // pred_check
      _
    $region3: #{conv_embedding.1} parent=1 // pred_check_branch
      %10 = sbr.rel (0) target = $region5
    $region4: #{conv_embedding.1} parent=1 // pred_region
      _
    $region5: #{conv_embedding.1} parent=1 // pred_fallthru
      _
    // Predicated region
    $region6: #{conv_embedding.1} parent=1 // pred_check
      _
    $region7: #{conv_embedding.1} parent=1 // pred_check_branch
      %12 = sbr.rel (0) target = $region9
    $region8: #{conv_embedding.1} parent=1 // pred_region
      _
    $region9: #{conv_embedding.1} parent=1 // pred_fallthru
      _
    // Predicated region
    $region10: #{conv_embedding.1} parent=1 // pred_check
      _
    $region11: #{conv_embedding.1} parent=1 // pred_check_branch
      %14 = sbr.rel (0) target = $region13
    $region12: #{conv_embedding.1} parent=1 // pred_region
      _
    $region13: #{conv_embedding.1} parent=1 // pred_fallthru
      _
    %v16 = vld [vmem:[%s0] sm:$0xf]
    %v17 = vld [vmem:[%s0 + $0x4] sm:$0xf]
    %v18 = vld [vmem:[%s0 + $0x8] sm:$0xf]
    %v19 = vld [vmem:[%s0 + $0xc] sm:$0xf]
    %v20 = vld [vmem:[%s1] sm:$0xf]
    %v21 = vld [vmem:[%s1 + $0x4] sm:$0xf]
    %v22 = vld [vmem:[%s1 + $0x8] sm:$0xf]
    %v23 = vld [vmem:[%s1 + $0xc] sm:$0xf]
    %v24 = vld [vmem:[%s1 + $0x10] sm:$0xf]
    %v25 = vld [vmem:[%s1 + $0x14] sm:$0xf]
    %v26 = vld [vmem:[%s1 + $0x18] sm:$0xf]
    %v27 = vld [vmem:[%s1 + $0x1c] sm:$0xf]
    %v28 = vld [vmem:[%s2] sm:$0x1]
    %v30 = vlaneseq
    %v31 = vshrl.u32 %v30, 7
    %v32 = vsub.s32 0, %v31
    %v33 = vrot.slane %v28, %v32
    %v39 = vunpack.c.l.b16 %v16
    %v40 = vunpack.c.l.b16 %v17
    %v41 = vunpack.c.l.b16 %v18
    %v42 = vunpack.c.l.b16 %v19
    %v43 = vpack.c.b16 %v40, %v39
    %v44 = vpack.c.b16 %v42, %v41
    %v53 = vunpack.c.l.b16 %v20
    %v54 = vunpack.c.l.b16 %v21
    %v55 = vunpack.c.l.b16 %v22
    %v56 = vunpack.c.l.b16 %v23
    %v57 = vunpack.c.l.b16 %v24
    %v58 = vunpack.c.l.b16 %v25
    %v59 = vunpack.c.l.b16 %v26
    %v60 = vunpack.c.l.b16 %v27
    %v61 = vpack.c.b16 %v54, %v53
    %v62 = vpack.c.b16 %v56, %v55
    %v63 = vpack.c.b16 %v58, %v57
    %v64 = vpack.c.b16 %v60, %v59
    %vm69 = vcmask 523264
    %v71 = vsel %vm69, %v43, 0
    %v74 = vsel %vm69, %v44, 0
    %76 = vmatprep.subr.bf16.mxu0 0
    %77 = vmatpush1.bf16.msra.mxu0 0
    %78 = vmatprep.subr.bf16.mxu0 0
    %79 = vmatpush1.bf16.msra.mxu0 0
    %80 = vmatprep.subr.bf16.mxu0 0
    %81 = vmatpush1.bf16.msra.mxu0 0
    %82 = vmatprep.subr.bf16.mxu0 0
    %83 = vmatpush1.bf16.msra.mxu0 0
    %84 = vmatprep.subr.bf16.mxu0 0
    %85 = vmatpush1.bf16.msra.mxu0 %v64
    %86 = vmatprep.subr.bf16.mxu0 0
    %87 = vmatpush1.bf16.msra.mxu0 %v63
    %88 = vmatprep.subr.bf16.mxu0 0
    %89 = vmatpush1.bf16.msra.mxu0 %v62
    %90 = vmatprep.subr.bf16.mxu0 0
    %91 = vmatpush1.bf16.msra.mxu0 %v61
    %92 = vmatprep.subr.bf16.mxu0 0
    %93 = vmatpush2.bf16.msra.mxu0 0
    %94 = vmatprep.subr.bf16.mxu0 0
    %95 = vmatpush2.bf16.msra.mxu0 0
    %96 = vmatprep.subr.bf16.mxu0 0
    %97 = vmatpush2.bf16.msra.mxu0 0
    %98 = vmatprep.subr.bf16.mxu0 0
    %99 = vmatpush2.bf16.msra.mxu0 0
    %100 = vmatprep.subr.bf16.mxu0 0
    %101 = vmatpush2.bf16.msra.mxu0 0
    %102 = vmatprep.subr.bf16.mxu0 0
    %103 = vmatpush2.bf16.msra.mxu0 0
    %104 = vmatprep.subr.bf16.mxu0 0
    %105 = vmatpush2.bf16.msra.mxu0 0
    %106 = vmatprep.subr.bf16.mxu0 0
    %107 = vmatpush2.bf16.msra.mxu0 0
    %108 = vmatprep.mubr.bf16.mxu0 0
    %109 = vmatmul.mubr.bf16.gmra.mxu0 %v71
    %v110 = vpop.f32.mrf.mxu0
    %v111 = vadd.f32 %v33, %v110
    %v112 = vpop.f32.mrf.mxu0
    %v113 = vpop.f32.mrf.mxu0
    %v114 = vadd.f32 %v33, %v113
    %v115 = vpop.f32.mrf.mxu0
    %116 = vmatprep.mubr.bf16.mxu0 0
    %117 = vmatmul.mubr.bf16.gmra.mxu0 %v74
    %v118 = vpop.f32.mrf.mxu0
    %v119 = vadd.f32 %v33, %v118
    %v120 = vpop.f32.mrf.mxu0
    %v121 = vpop.f32.mrf.mxu0
    %v122 = vadd.f32 %v33, %v121
    %v123 = vpop.f32.mrf.mxu0
    %124 = vdwg.mxu0
    %125 = vst [vmem:[#allocation2] sm:$0xff] %v111
    %126 = vst [vmem:[#allocation2 + $0x8] sm:$0xff] %v114
    %127 = vst [vmem:[#allocation2 + $0x10] sm:$0xff] %v119
    %128 = vst [vmem:[#allocation2 + $0x18] sm:$0xff] %v122
    // Predicated region
    $region14: #{conv_embedding.1} parent=1 // pred_check
      _
    $region15: #{conv_embedding.1} parent=1 // pred_check_branch
      %130 = sbr.rel (0) target = $region17
    $region16: #{conv_embedding.1} parent=1 // pred_region
      %s132 = ssub.s32 512, 512
      %133 = vsyncadd [#allocation3], %s132
      %s134 = sshll.u32 [#allocation2], 4
      %s135 = int_to_ptr.vmem [resolvable:$true] %s134
      %140 = dma.vmem_to_hbm [thread:$0]  %s135, 512, %s3, [#allocation3], 128, 128, 8
    $region17: #{conv_embedding.1} parent=1 // pred_fallthru
      _
    // Predicated region
    $region18: #{conv_embedding.1} parent=1 // pred_check
      _
    $region19: #{conv_embedding.1} parent=1 // pred_check_branch
      %142 = sbr.rel (0) target = $region21
    $region20: #{conv_embedding.1} parent=1 // pred_region
      %143 = dma.done [#allocation3], 512
    $region21: #{conv_embedding.1} parent=1 // pred_fallthru
      _
    %144 = vsyncpa [#allocation3], 1

</llo_original>
